<compile_context>
chip_gen: v5e
topology: v5e:2x2
jax: 0.10.0
libtpu: 0.0.40
codegen_flags: <defaults>
</compile_context>

<pallas_src>
import functools

import jax
import jax.numpy as jnp
from jax import lax
from jax.experimental import pallas as pl
from jax.experimental.pallas import tpu as pltpu


def _round_up(x, m):
    return (x + m - 1) // m * m


def _pick_tile(m, block_m):
    """Largest multiple of 8 <= block_m that divides m (falls back to block_m)."""
    block_m = max(8, (block_m // 8) * 8)
    if m <= block_m:
        return _round_up(m, 8)
    t = block_m
    while t >= 8:
        if m % t == 0:
            return t
        t -= 8
    return block_m


def create_position_ids_from_input_ids(input_ids, padding_idx, past_key_values_length=0):
    """JAX port of the fairseq-style position-id helper."""
    mask = (input_ids != padding_idx).astype(jnp.int32)
    incremental = (jnp.cumsum(mask, axis=1) + past_key_values_length) * mask
    return incremental + padding_idx


def create_position_ids_from_inputs_embeds(inputs_embeds, padding_idx):
    B, S = inputs_embeds.shape[:2]
    pos = jnp.arange(padding_idx + 1, S + padding_idx + 1, dtype=jnp.int32)
    return jnp.broadcast_to(pos[None, :], (B, S))


def _embeddings_kernel(*refs, gather_words, use_pos, use_langscript, lang_offset, eps):
    """Ref order:
       [tok_ids SMEM (scalar prefetch)]   if gather_words
       word_ref    : (V,H) HBM ref (ANY)  if gather_words else (tm,H) VMEM tile
       ids_ref     : (tm, ncols) int32    if use_pos or use_langscript
       tab_ref     : (K_pad, H)           if use_pos or use_langscript
       gamma_ref, beta_ref : (1, H)
       out_ref     : (tm, H)
       [wbuf (tm,H) VMEM, sem DMA(1,)]    if gather_words
    """
    it = iter(refs)
    tok_smem = next(it) if gather_words else None
    word_ref = next(it)
    have_tables = use_pos or use_langscript
    ids_ref = next(it) if have_tables else None
    tab_ref = next(it) if have_tables else None
    gamma_ref = next(it)
    beta_ref = next(it)
    out_ref = next(it)
    wbuf = next(it) if gather_words else None
    sem = next(it) if gather_words else None

    tm, H = out_ref.shape

    if gather_words:
        base = pl.program_id(0) * tm

        # Issue one row DMA per token of this tile (HBM word table -> VMEM).
        @pl.loop(0, tm)
        def _issue(r):
            tok = tok_smem[base + r]
            pltpu.make_async_copy(
                word_ref.at[pl.ds(tok, 1)], wbuf.at[pl.ds(r, 1)], sem.at[0]
            ).start()

    # Small-table contribution (position + lang/script) via a single one-hot
    # MXU matmul, executed while the word-row DMAs are in flight.
    if have_tables:
        K = tab_ref.shape[0]
        ids = ids_ref[...]
        iota = lax.broadcasted_iota(jnp.int32, (tm, K), 1)
        col = 0
        hit = None
        if use_pos:
            hit = iota == ids[:, col:col + 1]
            col += 1
        if use_langscript:
            h2 = iota == (ids[:, col:col + 1] + lang_offset)
            hit = h2 if hit is None else jnp.logical_or(hit, h2)
        one_hot = hit.astype(tab_ref.dtype)
        x = jnp.dot(one_hot, tab_ref[...], preferred_element_type=jnp.float32)
    else:
        x = jnp.zeros((tm, H), jnp.float32)

    if gather_words:
        # Wait for the gathered word rows, then add them.
        @pl.loop(0, tm)
        def _wait(r):
            tok = tok_smem[base + r]
            pltpu.make_async_copy(
                word_ref.at[pl.ds(tok, 1)], wbuf.at[pl.ds(r, 1)], sem.at[0]
            ).wait()

        x = x + wbuf[...].astype(jnp.float32)
    else:
        x = x + word_ref[...].astype(jnp.float32)

    # Fused LayerNorm, single-pass statistics (E[x], E[x^2]).
    mu = jnp.mean(x, axis=-1, keepdims=True)
    var = jnp.mean(x * x, axis=-1, keepdims=True) - mu * mu
    y = (x - mu) * lax.rsqrt(var + eps)
    y = y * gamma_ref[...].astype(jnp.float32) + beta_ref[...].astype(jnp.float32)
    out_ref[...] = y.astype(out_ref.dtype)


def xlmr_decoupled_embeddings(
    params,
    *,
    input_ids=None,
    inputs_embeds=None,
    token_lang_ids=None,
    token_script_ids=None,
    position_ids=None,
    past_key_values_length=0,
    padding_idx=1,
    eps=1e-5,
    use_lang_embedding=True,
    use_script_embedding=True,
    decouple_at_input_embeddings=True,
    position_embedding_type="absolute",
    block_m=512,
):
    """Returns embeddings [B, S, H] matching XLMRobertaDecoupledEmbeddings.forward."""
    use_lang = bool(decouple_at_input_embeddings and use_lang_embedding)
    use_script = bool(decouple_at_input_embeddings and use_script_embedding)
    use_pos = position_embedding_type == "absolute"
    use_langscript = use_lang or use_script

    if use_lang and token_lang_ids is None:
        raise ValueError("token_lang_ids cannot be None if use_lang_embed is True")
    if use_script and token_script_ids is None:
        raise ValueError("token_script_ids cannot be None if use_script_embedding is True")

    if position_ids is None:
        if input_ids is not None:
            position_ids = create_position_ids_from_input_ids(
                input_ids, padding_idx, past_key_values_length)
        else:
            position_ids = create_position_ids_from_inputs_embeds(inputs_embeds, padding_idx)

    gather_words = inputs_embeds is None
    if gather_words:
        if input_ids is None:
            raise ValueError("either input_ids or inputs_embeds must be provided")
        B, S = input_ids.shape
        word_table = params["word_embeddings"]
        H = word_table.shape[1]
        out_dtype = word_table.dtype
    else:
        B, S, H = inputs_embeds.shape
        out_dtype = inputs_embeds.dtype

    M = B * S
    tm = _pick_tile(M, block_m)
    M_pad = _round_up(M, tm)
    n_tiles = M_pad // tm

    def pad_ids(x):  # tiny int arrays only; pad value 0 is always a valid row
        extra = M_pad - x.shape[0]
        if extra == 0:
            return x
        return jnp.pad(x, ((0, extra),) + ((0, 0),) * (x.ndim - 1))

    # --- small lookup tables: position ++ (lang + script) combined ---
    have_tables = use_pos or use_langscript
    id_cols, tab_parts, lang_offset = [], [], 0
    if use_pos:
        id_cols.append(position_ids.reshape(M).astype(jnp.int32))
        tab_parts.append(params["position_embeddings"])
        lang_offset = params["position_embeddings"].shape[0]
    if use_langscript:
        id_cols.append(token_lang_ids.reshape(M).astype(jnp.int32))
        if use_lang and use_script:
            # NOTE: the reference module indexes BOTH tables with token_lang_ids
            # (upstream quirk), so they can be pre-summed into one table.
            lt = params["lang_type_embeddings"]
            st = params["script_type_embeddings"]
            n = max(lt.shape[0], st.shape[0])
            lt = jnp.pad(lt, ((0, n - lt.shape[0]), (0, 0)))
            st = jnp.pad(st, ((0, n - st.shape[0]), (0, 0)))
            tab_parts.append(lt + st)
        elif use_lang:
            tab_parts.append(params["lang_type_embeddings"])
        else:
            tab_parts.append(params["script_type_embeddings"])

    args, in_specs, scratch_shapes = [], [], []
    num_prefetch = 0

    if gather_words:
        num_prefetch = 1
        tok_flat = pad_ids(input_ids.reshape(M).astype(jnp.int32))
        args.append(tok_flat)                               # -> SMEM (scalar prefetch)
        args.append(word_table)                             # stays in HBM
        in_specs.append(pl.BlockSpec(memory_space=pl.ANY))
        scratch_shapes = [pltpu.VMEM((tm, H), word_table.dtype),
                          pltpu.SemaphoreType.DMA((1,))]
    else:
        embeds2 = inputs_embeds.reshape(M, H)
        if M_pad != M:
            embeds2 = jnp.pad(embeds2, ((0, M_pad - M), (0, 0)))
        args.append(embeds2)
        in_specs.append(pl.BlockSpec((tm, H), lambda i, *_: (i, 0)))

    table = None
    ids2 = None
    if have_tables:
        ids2 = pad_ids(jnp.stack(id_cols, axis=1))
        table = tab_parts[0] if len(tab_parts) == 1 else jnp.concatenate(tab_parts, axis=0)
        k_pad = _round_up(table.shape[0], 128)               # MXU / lane friendly K
        if k_pad != table.shape[0]:
            table = jnp.pad(table, ((0, k_pad - table.shape[0]), (0, 0)))
        args += [ids2, table]
        in_specs += [pl.BlockSpec((tm, ids2.shape[1]), lambda i, *_: (i, 0)),
                     pl.BlockSpec(table.shape, lambda i, *_: (0, 0))]

    ln_g = params["ln_g"].reshape(1, H)
    ln_b = params["ln_b"].reshape(1, H)
    args += [ln_g, ln_b]
    in_specs += [pl.BlockSpec((1, H), lambda i, *_: (0, 0)),
                 pl.BlockSpec((1, H), lambda i, *_: (0, 0))]

    # VMEM budget estimate -> scoped limit (kept within v7x's 64 MiB physical).
    def nbytes(shape, dtype):
        n = 1
        for d in shape:
            n *= d
        return n * jnp.dtype(dtype).itemsize

    est = nbytes((tm, H), out_dtype) * 2              # output (double-buffered)
    est += nbytes((tm, H), jnp.float32) * 2           # f32 temporaries
    if gather_words:
        est += nbytes((tm, H), word_table.dtype)      # gather scratch
    else:
        est += nbytes((tm, H), out_dtype) * 2         # embeds block (double-buffered)
    if have_tables:
        est += nbytes(table.shape, table.dtype) * 2
        est += nbytes((tm, table.shape[0]), jnp.float32) * 2   # one-hot + iota
        est += nbytes((tm, ids2.shape[1]), jnp.int32) * 2
    vmem_limit = int(min(max(est * 2, 32 * 1024 * 1024), 64 * 1024 * 1024))

    kernel = functools.partial(
        _embeddings_kernel,
        gather_words=gather_words, use_pos=use_pos, use_langscript=use_langscript,
        lang_offset=lang_offset, eps=float(eps))

    out = pl.pallas_call(
        kernel,
        out_shape=jax.ShapeDtypeStruct((M_pad, H), out_dtype),
        grid_spec=pltpu.PrefetchScalarGridSpec(
            num_scalar_prefetch=num_prefetch,
            grid=(n_tiles,),
            in_specs=in_specs,
            out_specs=pl.BlockSpec((tm, H), lambda i, *_: (i, 0)),
            scratch_shapes=scratch_shapes,
        ),
        compiler_params=pltpu.CompilerParams(
            dimension_semantics=("parallel",),
            vmem_limit_bytes=vmem_limit),
    )(*args)

    if M_pad != M:
        out = out[:M]
    # dropout(p) is identity in eval mode.
    return out.reshape(B, S, H)


def _reference(params, input_ids, token_lang_ids, padding_idx, eps, use_lang, use_script):
    pos_ids = create_position_ids_from_input_ids(input_ids, padding_idx)
    x = params["word_embeddings"][input_ids]
    if use_lang:
        x = x + params["lang_type_embeddings"][token_lang_ids]
    if use_script:
        # replicate the original module: script table indexed by token_lang_ids
        x = x + params["script_type_embeddings"][token_lang_ids]
    x = x + params["position_embeddings"][pos_ids]
    mu = jnp.mean(x, axis=-1, keepdims=True)
    var = jnp.mean(jnp.square(x - mu), axis=-1, keepdims=True)
    x = (x - mu) / jnp.sqrt(var + eps)
    return x * params["ln_g"] + params["ln_b"]


if __name__ == "__main__":
    B, S, H = 2, 8, 64
    vocab_size, max_pos, lang_size, script_size = 256, 48, 16, 16
    pad_token_id = 1
    eps = 1e-5

    key = jax.random.PRNGKey(0)
    ks = jax.random.split(key, 10)

    params = {
        "word_embeddings": 0.02 * jax.random.normal(ks[0], (vocab_size, H), jnp.float32),
        "position_embeddings": 0.02 * jax.random.normal(ks[1], (max_pos, H), jnp.float32),
        "lang_type_embeddings": 0.02 * jax.random.normal(ks[2], (lang_size, H), jnp.float32),
        "script_type_embeddings": 0.02 * jax.random.normal(ks[3], (script_size, H), jnp.float32),
        "ln_g": 1.0 + 0.1 * jax.random.normal(ks[4], (H,), jnp.float32),
        "ln_b": 0.1 * jax.random.normal(ks[5], (H,), jnp.float32),
    }

    input_ids = jax.random.randint(ks[6], (B, S), 2, vocab_size)
    input_ids = input_ids.at[0, 6:].set(pad_token_id)   # exercise the padding mask
    input_ids = input_ids.at[1, 5:].set(pad_token_id)
    token_lang_ids = jax.random.randint(ks[7], (B, S), 0, lang_size)
    token_script_ids = jax.random.randint(ks[8], (B, S), 0, script_size)

    out = xlmr_decoupled_embeddings(
        params,
        input_ids=input_ids,
        token_lang_ids=token_lang_ids,
        token_script_ids=token_script_ids,
        padding_idx=pad_token_id,
        eps=eps,
        use_lang_embedding=True,
        use_script_embedding=True,
        decouple_at_input_embeddings=True,
        position_embedding_type="absolute",
        block_m=512,
    )
    out = jax.block_until_ready(out)

    ref = _reference(params, input_ids, token_lang_ids, pad_token_id, eps,
                     use_lang=True, use_script=True)
    assert out.shape == (B, S, H)
    assert jnp.max(jnp.abs(out - ref)) < 1e-4

    print("KERNEL_OK")
</pallas_src>

<mosaic_0001>
module attributes {stable_mosaic.version = 11 : i64} {
  func.func @_embeddings_kernel(%arg0: i32, %arg1: memref<16xi32, #tpu.memory_space<smem>>, %arg2: memref<256x64xf32, #tpu.memory_space<any>>, %arg3: memref<16x2xi32, #tpu.memory_space<vmem>>, %arg4: memref<128x64xf32, #tpu.memory_space<vmem>>, %arg5: memref<1x64xf32, #tpu.memory_space<vmem>>, %arg6: memref<1x64xf32, #tpu.memory_space<vmem>>, %arg7: memref<16x64xf32, #tpu.memory_space<vmem>>, %arg8: memref<16x64xf32, #tpu.memory_space<vmem>>, %arg9: memref<1x!tpu.dma_semaphore, #tpu.memory_space<semaphore_mem>>) attributes {dimension_semantics = [#tpu.dimension_semantics<parallel>], iteration_bounds = array<i64: 1>, scalar_prefetch = 1 : i64, scratch_operands = 2 : i64, tpu.core_type = #tpu.core_type<tc>, window_params = [{}, {transform_indices = @transform_1, window_bounds = array<i64: 16, 2>}, {pipeline_mode = #tpu.pipeline_mode<synchronous>, transform_indices = @transform_2, window_bounds = array<i64: 128, 64>}, {pipeline_mode = #tpu.pipeline_mode<synchronous>, transform_indices = @transform_3, window_bounds = array<i64: 1, 64>}, {pipeline_mode = #tpu.pipeline_mode<synchronous>, transform_indices = @transform_4, window_bounds = array<i64: 1, 64>}, {transform_indices = @transform_5, window_bounds = array<i64: 16, 64>}]} {
    %c16_i32 = arith.constant 16 : i32
    %0 = arith.muli %arg0, %c16_i32 : i32
    %c0_i32 = arith.constant 0 : i32
    %c16_i32_0 = arith.constant 16 : i32
    %1 = arith.addi %c0_i32, %c16_i32_0 : i32
    %c1_i32 = arith.constant 1 : i32
    scf.for %arg10 = %c0_i32 to %1 step %c1_i32  : i32 {
      %c1_i32_22 = arith.constant 1 : i32
      %45 = arith.muli %arg10, %c1_i32_22 : i32
      %c0_i32_23 = arith.constant 0 : i32
      %46 = arith.addi %c0_i32_23, %45 : i32
      %47 = arith.addi %0, %46 : i32
      %48 = arith.index_cast %47 : i32 to index
      %49 = memref.load %arg1[%48] : memref<16xi32, #tpu.memory_space<smem>>
      %c0_i32_24 = arith.constant 0 : i32
      %c0_i32_25 = arith.constant 0 : i32
      %50 = tpu.memref_slice %arg2[%49, %c0_i32_25] : memref<256x64xf32, #tpu.memory_space<any>> -> memref<1x64xf32, #tpu.memory_space<any>>
      %c0_i32_26 = arith.constant 0 : i32
      %51 = tpu.memref_slice %arg8[%46, %c0_i32_26] : memref<16x64xf32, #tpu.memory_space<vmem>> -> memref<1x64xf32, #tpu.memory_space<vmem>>
      %52 = tpu.memref_slice %arg9[%c0_i32_24] : memref<1x!tpu.dma_semaphore, #tpu.memory_space<semaphore_mem>> -> memref<1x!tpu.dma_semaphore, #tpu.memory_space<semaphore_mem>>
      %53 = tpu.memref_squeeze %52 : memref<1x!tpu.dma_semaphore, #tpu.memory_space<semaphore_mem>> -> memref<!tpu.dma_semaphore, #tpu.memory_space<semaphore_mem>>
      tpu.enqueue_dma source(%50 : memref<1x64xf32, #tpu.memory_space<any>>) target(%51 : memref<1x64xf32, #tpu.memory_space<vmem>>) target_semaphore(%53 : memref<!tpu.dma_semaphore, #tpu.memory_space<semaphore_mem>>)
    }
    %c16_i32_1 = arith.constant 16 : i32
    %c0 = arith.constant 0 : index
    %c0_2 = arith.constant 0 : index
    %2 = vector.load %arg3[%c0, %c0_2] : memref<16x2xi32, #tpu.memory_space<vmem>>, vector<16x2xi32>
    %3 = tpu.iota {dimensions = array<i32: 1>} : vector<16x128xi32>
    %4 = vector.extract_strided_slice %2 {offsets = [0, 0], sizes = [16, 1], strides = [1, 1]} : vector<16x2xi32> to vector<16x1xi32>
    %5 = vector.broadcast %4 : vector<16x1xi32> to vector<16x128xi32>
    %6 = arith.cmpi eq, %3, %5 : vector<16x128xi32>
    %7 = vector.extract_strided_slice %2 {offsets = [0, 1], sizes = [16, 1], strides = [1, 1]} : vector<16x2xi32> to vector<16x1xi32>
    %c48_i32 = arith.constant 48 : i32
    %8 = vector.broadcast %c48_i32 : i32 to vector<16x1xi32>
    %9 = arith.addi %7, %8 : vector<16x1xi32>
    %10 = vector.broadcast %9 : vector<16x1xi32> to vector<16x128xi32>
    %11 = arith.cmpi eq, %3, %10 : vector<16x128xi32>
    %12 = arith.ori %6, %11 : vector<16x128xi1>
    %13 = arith.extui %12 : vector<16x128xi1> to vector<16x128xi32>
    %14 = arith.sitofp %13 : vector<16x128xi32> to vector<16x128xf32>
    %c0_3 = arith.constant 0 : index
    %c0_4 = arith.constant 0 : index
    %15 = vector.load %arg4[%c0_3, %c0_4] : memref<128x64xf32, #tpu.memory_space<vmem>>, vector<128x64xf32>
    %cst = arith.constant dense<0.000000e+00> : vector<16x64xf32>
    %16 = tpu.matmul %14, %15, %cst {dimension_numbers = #tpu.dot_dimension_numbers<[1], [0], [0], [1], [0, 0, 1, 1], [], []>} : vector<16x128xf32>, vector<128x64xf32>, vector<16x64xf32> -> vector<16x64xf32>
    %c0_i32_5 = arith.constant 0 : i32
    %c16_i32_6 = arith.constant 16 : i32
    %17 = arith.addi %c0_i32_5, %c16_i32_6 : i32
    %c1_i32_7 = arith.constant 1 : i32
    scf.for %arg10 = %c0_i32_5 to %17 step %c1_i32_7  : i32 {
      %c1_i32_22 = arith.constant 1 : i32
      %45 = arith.muli %arg10, %c1_i32_22 : i32
      %c0_i32_23 = arith.constant 0 : i32
      %46 = arith.addi %c0_i32_23, %45 : i32
      %47 = arith.addi %0, %46 : i32
      %48 = arith.index_cast %47 : i32 to index
      %49 = memref.load %arg1[%48] : memref<16xi32, #tpu.memory_space<smem>>
      %c0_i32_24 = arith.constant 0 : i32
      %c0_i32_25 = arith.constant 0 : i32
      %50 = tpu.memref_slice %arg2[%49, %c0_i32_25] : memref<256x64xf32, #tpu.memory_space<any>> -> memref<1x64xf32, #tpu.memory_space<any>>
      %c0_i32_26 = arith.constant 0 : i32
      %51 = tpu.memref_slice %arg8[%46, %c0_i32_26] : memref<16x64xf32, #tpu.memory_space<vmem>> -> memref<1x64xf32, #tpu.memory_space<vmem>>
      %52 = tpu.memref_slice %arg9[%c0_i32_24] : memref<1x!tpu.dma_semaphore, #tpu.memory_space<semaphore_mem>> -> memref<1x!tpu.dma_semaphore, #tpu.memory_space<semaphore_mem>>
      %53 = tpu.memref_squeeze %52 : memref<1x!tpu.dma_semaphore, #tpu.memory_space<semaphore_mem>> -> memref<!tpu.dma_semaphore, #tpu.memory_space<semaphore_mem>>
      tpu.wait_dma2 semaphore(%53 : memref<!tpu.dma_semaphore, #tpu.memory_space<semaphore_mem>>) src(%50 : memref<1x64xf32, #tpu.memory_space<any>>) dst(%51 : memref<1x64xf32, #tpu.memory_space<vmem>>)
    }
    %c16_i32_8 = arith.constant 16 : i32
    %c0_9 = arith.constant 0 : index
    %c0_10 = arith.constant 0 : index
    %18 = vector.load %arg8[%c0_9, %c0_10] : memref<16x64xf32, #tpu.memory_space<vmem>>, vector<16x64xf32>
    %19 = arith.addf %16, %18 : vector<16x64xf32>
    %cst_11 = arith.constant dense<0.000000e+00> : vector<16xf32>
    %20 = vector.multi_reduction <add>, %19, %cst_11 [1] : vector<16x64xf32> to vector<16xf32>
    %21 = vector.shape_cast %20 : vector<16xf32> to vector<16x1xf32>
    %cst_12 = arith.constant 6.400000e+01 : f32
    %22 = vector.broadcast %cst_12 : f32 to vector<16x1xf32>
    %23 = arith.divf %21, %22 : vector<16x1xf32>
    %24 = arith.mulf %19, %19 : vector<16x64xf32>
    %cst_13 = arith.constant dense<0.000000e+00> : vector<16xf32>
    %25 = vector.multi_reduction <add>, %24, %cst_13 [1] : vector<16x64xf32> to vector<16xf32>
    %26 = vector.shape_cast %25 : vector<16xf32> to vector<16x1xf32>
    %cst_14 = arith.constant 6.400000e+01 : f32
    %27 = vector.broadcast %cst_14 : f32 to vector<16x1xf32>
    %28 = arith.divf %26, %27 : vector<16x1xf32>
    %29 = arith.mulf %23, %23 : vector<16x1xf32>
    %30 = arith.subf %28, %29 : vector<16x1xf32>
    %31 = vector.broadcast %23 : vector<16x1xf32> to vector<16x64xf32>
    %32 = arith.subf %19, %31 : vector<16x64xf32>
    %cst_15 = arith.constant 9.99999974E-6 : f32
    %33 = vector.broadcast %cst_15 : f32 to vector<16x1xf32>
    %34 = arith.addf %30, %33 : vector<16x1xf32>
    %35 = math.rsqrt %34 : vector<16x1xf32>
    %36 = vector.broadcast %35 : vector<16x1xf32> to vector<16x64xf32>
    %37 = arith.mulf %32, %36 : vector<16x64xf32>
    %c0_16 = arith.constant 0 : index
    %c0_17 = arith.constant 0 : index
    %38 = vector.load %arg5[%c0_16, %c0_17] : memref<1x64xf32, #tpu.memory_space<vmem>>, vector<1x64xf32>
    %39 = vector.broadcast %38 : vector<1x64xf32> to vector<16x64xf32>
    %40 = arith.mulf %37, %39 : vector<16x64xf32>
    %c0_18 = arith.constant 0 : index
    %c0_19 = arith.constant 0 : index
    %41 = vector.load %arg6[%c0_18, %c0_19] : memref<1x64xf32, #tpu.memory_space<vmem>>, vector<1x64xf32>
    %42 = vector.broadcast %41 : vector<1x64xf32> to vector<16x64xf32>
    %43 = arith.addf %40, %42 : vector<16x64xf32>
    %c0_20 = arith.constant 0 : index
    %c0_21 = arith.constant 0 : index
    %44 = vector.load %arg7[%c0_20, %c0_21] : memref<16x64xf32, #tpu.memory_space<vmem>>, vector<16x64xf32>
    tpu.vector_store %arg7[%c0_20, %c0_21], %43 {strides = array<i32>} : memref<16x64xf32, #tpu.memory_space<vmem>>, vector<16x64xf32>,
    return
  }
  func.func @transform_1(%arg0: i32, %arg1: memref<16xi32, #tpu.memory_space<smem>>) -> (i32, i32) {
    %c0_i32 = arith.constant 0 : i32
    %c0_i32_0 = arith.constant 0 : i32
    return %arg0, %c0_i32 : i32, i32
  }
  func.func @transform_2(%arg0: i32, %arg1: memref<16xi32, #tpu.memory_space<smem>>) -> (i32, i32) {
    %c0_i32 = arith.constant 0 : i32
    %c0_i32_0 = arith.constant 0 : i32
    %c0_i32_1 = arith.constant 0 : i32
    return %c0_i32, %c0_i32_0 : i32, i32
  }
  func.func @transform_3(%arg0: i32, %arg1: memref<16xi32, #tpu.memory_space<smem>>) -> (i32, i32) {
    %c0_i32 = arith.constant 0 : i32
    %c0_i32_0 = arith.constant 0 : i32
    %c0_i32_1 = arith.constant 0 : i32
    return %c0_i32, %c0_i32_0 : i32, i32
  }
  func.func @transform_4(%arg0: i32, %arg1: memref<16xi32, #tpu.memory_space<smem>>) -> (i32, i32) {
    %c0_i32 = arith.constant 0 : i32
    %c0_i32_0 = arith.constant 0 : i32
    %c0_i32_1 = arith.constant 0 : i32
    return %c0_i32, %c0_i32_0 : i32, i32
  }
  func.func @transform_5(%arg0: i32, %arg1: memref<16xi32, #tpu.memory_space<smem>>) -> (i32, i32) {
    %c0_i32 = arith.constant 0 : i32
    %c0_i32_0 = arith.constant 0 : i32
    return %arg0, %c0_i32 : i32, i32
  }
}

</mosaic_0001>

<llo_original>
// kernel: tpu_custom_call.1
$region0: #{tpu_custom_call.1}
  #allocation0 [shape = 'u32[]', space=smem, size = 0x4, offset = 0x4, fixed_abs, tag = 'smem constant byte address 0x4 - core index']
  #allocation1 [shape = 'u32[72,128]{1,0:T(1,128)}', space=vmem, size = 0x9000, scoped, tag = 'internal scratch']
  #allocation2 [shape = 'f32[16,64]{1,0:T(8,128)}', space=vmem, size = 0x2000, scoped, tag = 'scratch operand']
  #allocation3 [shape = 's32[1]{0}', space=sflag, size = 0x4, scoped, tag = 'scratch operand']
  #allocation4 [shape = 's32[1]{0}', space=sflag, size = 0x4, scoped, tag = 'scoped memory for tpu_custom_call.1']
  #allocation5 [shape = 'u8[512]{0}', space=smem, size = 0x200, scoped, tag = 'prefetched SMEM operand 0']
  #allocation8 [shape = 's32[]', space=sflag, size = 0x4, offset = 0, fixed_abs, tag = 'sflag constant byte address 0x0 - dummy sync flag']
  %s0 = inlined_call_operand.vmem [shape: s32[16], index: 0, kind: input, shape index: {}]
  %s1 = inlined_call_operand.vmem [shape: f32[256,64], index: 1, kind: input, shape index: {}]
  %s2 = inlined_call_operand.vmem [shape: s32[16,2], index: 2, kind: input, shape index: {}]
  %s3 = inlined_call_operand.vmem [shape: f32[128,64], index: 3, kind: input, shape index: {}]
  %s4 = inlined_call_operand.vmem [shape: f32[1,64], index: 4, kind: input, shape index: {}]
  %s5 = inlined_call_operand.vmem [shape: f32[1,64], index: 5, kind: input, shape index: {}]
  %s6 = inlined_call_operand.hbm [shape: f32[16,64], index: 6, kind: output, shape index: {}]
  %s7 = sld [smem:[#allocation0]]
  $region70: #{tpu_custom_call.1} parent=0
    _
  %s9 = ssub.s32 1, %s7
  %s10 = scalar_select 0, %s9, %s7
  %s12 = sshll.u32 %s0, 4
  %s13 = int_to_ptr.vmem [resolvable:$true] %s12
  %15 = dma.vmem_to_smem %s13, 16, [#allocation5], [#allocation4]
  %17 = dma.done [#allocation4], 16
  %18 = sfence
  $region1: #{tpu_custom_call.1} parent=0
    #allocation6 [shape = 'u8[8192]{0}', space=vmem, size = 0x2000, scoped, tag = 'output window, operand 0, single buffered']
    #allocation7 [shape = 's32[1]{0}', space=sflag, size = 0x4, scoped, tag = 'scoped memory for tpu_custom_call.1']
    %19 = vsyncpa [#allocation7], 0
    // Predicated region
    $region2: #{tpu_custom_call.1} parent=1 // pred_check
      _
    $region3: #{tpu_custom_call.1} parent=1 // pred_check_branch
      %21 = sbr.rel (0) target = $region5
    $region4: #{tpu_custom_call.1} parent=1 // pred_region
      _
    $region5: #{tpu_custom_call.1} parent=1 // pred_fallthru
      _
    // Predicated region
    $region6: #{tpu_custom_call.1} parent=1 // pred_check
      _
    $region7: #{tpu_custom_call.1} parent=1 // pred_check_branch
      %23 = sbr.rel (0) target = $region9
    $region8: #{tpu_custom_call.1} parent=1 // pred_region
      _
    $region9: #{tpu_custom_call.1} parent=1 // pred_fallthru
      _
    // Predicated region
    $region10: #{tpu_custom_call.1} parent=1 // pred_check
      _
    $region11: #{tpu_custom_call.1} parent=1 // pred_check_branch
      %25 = sbr.rel (0) target = $region13
    $region12: #{tpu_custom_call.1} parent=1 // pred_region
      _
    $region13: #{tpu_custom_call.1} parent=1 // pred_fallthru
      _
    // Predicated region
    $region14: #{tpu_custom_call.1} parent=1 // pred_check
      _
    $region15: #{tpu_custom_call.1} parent=1 // pred_check_branch
      %27 = sbr.rel (0) target = $region17
    $region16: #{tpu_custom_call.1} parent=1 // pred_region
      _
    $region17: #{tpu_custom_call.1} parent=1 // pred_fallthru
      _
    %s28 = smul.u32 0, 16
    loop: start=0, step=1, limit=16
    $region18: #{tpu_custom_call.1} parent=1 // loop_pre_header
      _
    $region19: #{tpu_custom_call.1} parent=1 // loop_header
      %s30 = sphi 0, %s34
      %p31 = scmp.ge.s32.totalorder %s30, 16
    $region20: #{tpu_custom_call.1} parent=1 // loop_header_branch
      %33 = sbr.rel (%p31) target = $region24
    $region21: #{tpu_custom_call.1} parent=1 // loop_body
      %s35 = sadd.s32 %s28, %s30
      %s36 = sld [smem:[#allocation5 + %s35]]
      %s37 = scalar_lea.vmem %s1, %s36
      %s38 = scalar_lea.vmem [#allocation2], %s30
      // Predicated region
      $region25: #{tpu_custom_call.1} parent=21 // pred_check
        _
      $region26: #{tpu_custom_call.1} parent=21 // pred_check_branch
        %40 = sbr.rel target = $region28
      $region27: #{tpu_custom_call.1} parent=21 // pred_region
        // Predicated region
        $region40: #{tpu_custom_call.1} parent=27 // pred_check
          _
        $region41: #{tpu_custom_call.1} parent=27 // pred_check_branch
          %56 = sbr.rel (0) target = $region43
        $region42: #{tpu_custom_call.1} parent=27 // pred_region
          %s58 = ssub.s32 2, 1
          loop: start=0, step=1, limit=1
          $region44: #{tpu_custom_call.1} parent=42 // loop_pre_header
            _
          $region45: #{tpu_custom_call.1} parent=42 // loop_header
            %s60 = sphi 0, %s64
            %p61 = scmp.ge.s32.totalorder %s60, 1
            %s65 = sphi %s37, %s37
            %s66 = sphi %s38, %s38
          $region46: #{tpu_custom_call.1} parent=42 // loop_header_branch
            %63 = sbr.rel (%p61) target = $region50
          $region47: #{tpu_custom_call.1} parent=42 // loop_body
            %v67 = vld [vmem:[%s65] sm:%s58]
            %68 = vst [vmem:[%s66] sm:%s58] %v67
          $region48: #{tpu_custom_call.1} parent=42 // loop_footer
            %s64 = sadd.s32 1, %s60
          $region49: #{tpu_custom_call.1} parent=42 // loop_footer_branch
            %59 = sbr.rel target = $region45
          $region50: #{tpu_custom_call.1} parent=42 // loop_exit
            _
        $region43: #{tpu_custom_call.1} parent=27 // pred_fallthru
          _
      $region28: #{tpu_custom_call.1} parent=21 // pred_fallthru
        _
      // Predicated region
      $region29: #{tpu_custom_call.1} parent=21 // pred_check
        _
      $region30: #{tpu_custom_call.1} parent=21 // pred_check_branch
        %42 = sbr.rel (0) target = $region32
      $region31: #{tpu_custom_call.1} parent=21 // pred_region
        %s44 = ssub.s32 2, 1
        loop: start=0, step=1, limit=1
        $region33: #{tpu_custom_call.1} parent=31 // loop_pre_header
          _
        $region34: #{tpu_custom_call.1} parent=31 // loop_header
          %s46 = sphi 0, %s50
          %p47 = scmp.ge.s32.totalorder %s46, 1
          %s51 = sphi %s37, %s37
          %s52 = sphi %s38, %s38
        $region35: #{tpu_custom_call.1} parent=31 // loop_header_branch
          %49 = sbr.rel (%p47) target = $region39
        $region36: #{tpu_custom_call.1} parent=31 // loop_body
          %v53 = vld [vmem:[%s51] sm:%s44]
          %54 = vst [vmem:[%s52] sm:%s44] %v53
        $region37: #{tpu_custom_call.1} parent=31 // loop_footer
          %s50 = sadd.s32 1, %s46
        $region38: #{tpu_custom_call.1} parent=31 // loop_footer_branch
          %45 = sbr.rel target = $region34
        $region39: #{tpu_custom_call.1} parent=31 // loop_exit
          _
      $region32: #{tpu_custom_call.1} parent=21 // pred_fallthru
        _
      // Predicated region
      $region51: #{tpu_custom_call.1} parent=21 // pred_check
        _
      $region52: #{tpu_custom_call.1} parent=21 // pred_check_branch
        %71 = sbr.rel (0) target = $region54
      $region53: #{tpu_custom_call.1} parent=21 // pred_region
        %72 = vsyncadd [#allocation3], 16
      $region54: #{tpu_custom_call.1} parent=21 // pred_fallthru
        _
    $region22: #{tpu_custom_call.1} parent=1 // loop_footer
      %s34 = sadd.s32 1, %s30
    $region23: #{tpu_custom_call.1} parent=1 // loop_footer_branch
      %29 = sbr.rel target = $region19
    $region24: #{tpu_custom_call.1} parent=1 // loop_exit
      _
    %v73 = vld [vmem:[%s2] sm:$0xff]
    %v74 = vld [vmem:[%s2 + $0x8] sm:$0xff]
    %v75 = vlaneseq
    %v76 = vand.u32 %v75, 127
    %77 = vset.pattern.permute.xlu0 0
    %78 = vperm.xlu0 %77, %v73
    %v79 = vpop.permute.xlu0 %78
    %80 = vset.pattern.permute.xlu0 0
    %81 = vperm.xlu0 %80, %v74
    %v82 = vpop.permute.xlu0 %81
    %vm83 = vcmp.eq.s32.totalorder %v76, %v79
    %vm84 = vcmp.eq.s32.totalorder %v76, %v82
    %v85 = vadd.s32 %v73, 48
    %v86 = vadd.s32 %v74, 48
    %87 = vset.pattern.permute.xlu0 1
    %88 = vperm.xlu0 %87, %v85
    %v89 = vpop.permute.xlu0 %88
    %90 = vset.pattern.permute.xlu0 1
    %91 = vperm.xlu0 %90, %v86
    %v92 = vpop.permute.xlu0 %91
    %vm93 = vcmp.eq.s32.totalorder %v76, %v89
    %vm94 = vcmp.eq.s32.totalorder %v76, %v92
    %vm95 = vmor %vm83, %vm93
    %vm96 = vmor %vm84, %vm94
    %v97 = vsel %vm95, 1, 0
    %v98 = vsel %vm96, 1, 0
    %v99 = vcvt.s32.f32 %v97
    %v100 = vcvt.s32.f32 %v98
    %v101 = vld [vmem:[%s3] sm:$0xff]
    %v102 = vld [vmem:[%s3 + $0x8] sm:$0xff]
    %v103 = vld [vmem:[%s3 + $0x10] sm:$0xff]
    %v104 = vld [vmem:[%s3 + $0x18] sm:$0xff]
    %v105 = vld [vmem:[%s3 + $0x20] sm:$0xff]
    %v106 = vld [vmem:[%s3 + $0x28] sm:$0xff]
    %v107 = vld [vmem:[%s3 + $0x30] sm:$0xff]
    %v108 = vld [vmem:[%s3 + $0x38] sm:$0xff]
    %v109 = vld [vmem:[%s3 + $0x40] sm:$0xff]
    %v110 = vld [vmem:[%s3 + $0x48] sm:$0xff]
    %v111 = vld [vmem:[%s3 + $0x50] sm:$0xff]
    %v112 = vld [vmem:[%s3 + $0x58] sm:$0xff]
    %v113 = vld [vmem:[%s3 + $0x60] sm:$0xff]
    %v114 = vld [vmem:[%s3 + $0x68] sm:$0xff]
    %v115 = vld [vmem:[%s3 + $0x70] sm:$0xff]
    %v116 = vld [vmem:[%s3 + $0x78] sm:$0xff]
    loop: start=0, step=1, limit=16
    $region55: #{tpu_custom_call.1} parent=1 // loop_pre_header
      _
    $region56: #{tpu_custom_call.1} parent=1 // loop_header
      %s118 = sphi 0, %s122
      %p119 = scmp.ge.s32.totalorder %s118, 16
    $region57: #{tpu_custom_call.1} parent=1 // loop_header_branch
      %121 = sbr.rel (%p119) target = $region61
    $region58: #{tpu_custom_call.1} parent=1 // loop_body
      %s123 = sadd.s32 %s28, %s118
      %s124 = sld [smem:[#allocation5 + %s123]]
      %s125 = smul.u32 1, 1
      %s126 = sshll.u32 %s125, 4
      %127 = dma.done [#allocation3], %s126
    $region59: #{tpu_custom_call.1} parent=1 // loop_footer
      %s122 = sadd.s32 1, %s118
    $region60: #{tpu_custom_call.1} parent=1 // loop_footer_branch
      %117 = sbr.rel target = $region56
    $region61: #{tpu_custom_call.1} parent=1 // loop_exit
      _
    %v128 = vld [vmem:[#allocation2] sm:$0xff]
    %v129 = vld [vmem:[#allocation2 + $0x8] sm:$0xff]
    %130 = vmatpush.msra.mxu0 %v116
    %131 = vmatpush.msra.mxu0 %v115
    %132 = vmatpush.msra.mxu0 %v114
    %133 = vmatpush.msra.mxu0 %v113
    %134 = vmatpush.msra.mxu0 %v112
    %135 = vmatpush.msra.mxu0 %v111
    %136 = vmatpush.msra.mxu0 %v110
    %137 = vmatpush.msra.mxu0 %v109
    %138 = vmatpush.msra.mxu0 %v108
    %139 = vmatpush.msra.mxu0 %v107
    %140 = vmatpush.msra.mxu0 %v106
    %141 = vmatpush.msra.mxu0 %v105
    %142 = vmatpush.msra.mxu0 %v104
    %143 = vmatpush.msra.mxu0 %v103
    %144 = vmatpush.msra.mxu0 %v102
    %145 = vmatpush.msra.mxu0 %v101
    %146 = vmatmul.f32.gmra.mxu0 %v99
    %v147 = vpop.f32.mrf.mxu0
    %v148 = vadd.f32 %v128, %v147
    %149 = vmatmul.f32.gmra.mxu0 %v100
    %v150 = vpop.f32.mrf.mxu0
    %v151 = vadd.f32 %v129, %v150
    %152 = vdwg.mxu0
    %vm153 = vcmask 523264
    %v154 = vsel %vm153, %v148, 0.0
    %155 = vadd.xlane.f32.xlu0 %v154
    %v156 = vpop.xlane.xlu0 %155
    %v157 = vsel %vm153, %v151, 0.0
    %158 = vadd.xlane.f32.xlu0 %v157
    %v159 = vpop.xlane.xlu0 %158
    %v160 = vrcp.pop 64.0
    %v161 = vmul.f32 64.0, %v160
    %v162 = vsub.f32 1.0, %v161
    %v163 = vmul.f32 %v160, %v162
    %v164 = vadd.f32 %v160, %v163
    %vm165 = vweird.f32 %v160
    %v166 = vsel %vm165, %v160, %v164
    %v167 = vmul.f32 %v156, %v166
    %v168 = vmul.f32 %v159, %v166
    %v169 = vmul.f32 %v148, %v148
    %v170 = vmul.f32 %v151, %v151
    %v171 = vsel %vm153, %v169, 0.0
    %172 = vadd.xlane.f32.xlu0 %v171
    %v173 = vpop.xlane.xlu0 %172
    %v174 = vsel %vm153, %v170, 0.0
    %175 = vadd.xlane.f32.xlu0 %v174
    %v176 = vpop.xlane.xlu0 %175
    %v177 = vmul.f32 %v173, %v166
    %v178 = vmul.f32 %v176, %v166
    %v179 = vmul.f32 %v167, %v167
    %v180 = vmul.f32 %v168, %v168
    %v181 = vsub.f32 %v177, %v179
    %v182 = vsub.f32 %v178, %v180
    %v183 = vsub.f32 %v148, %v167
    %v184 = vsub.f32 %v151, %v168
    %v185 = vadd.f32 %v181, 1e-05
    %v186 = vadd.f32 %v182, 1e-05
    %v187 = vrsqrt.pop %v185
    %v188 = vmul.f32 %v187, %v185
    %v189 = vmul.f32 %v188, %v187
    %v190 = vmul.f32 0.5, %v189
    %v191 = vsub.f32 1.5, %v190
    %v192 = vmul.f32 %v187, %v191
    %vm193 = vweird.f32 %v185
    %vm194 = vweird.f32 %v187
    %vm195 = vmor %vm193, %vm194
    %v196 = vsel %vm195, %v187, %v192
    %v197 = vrsqrt.pop %v186
    %v198 = vmul.f32 %v197, %v186
    %v199 = vmul.f32 %v198, %v197
    %v200 = vmul.f32 0.5, %v199
    %v201 = vsub.f32 1.5, %v200
    %v202 = vmul.f32 %v197, %v201
    %vm203 = vweird.f32 %v186
    %vm204 = vweird.f32 %v197
    %vm205 = vmor %vm203, %vm204
    %v206 = vsel %vm205, %v197, %v202
    %v207 = vmul.f32 %v183, %v196
    %v208 = vmul.f32 %v184, %v206
    %v209 = vld [vmem:[%s4] sm:$0x1]
    %v211 = vperm.slane %v209, 0
    %v213 = vmul.f32 %v207, %v211
    %v214 = vmul.f32 %v208, %v211
    %v215 = vld [vmem:[%s5] sm:$0x1]
    %v217 = vperm.slane %v215, 0
    %v219 = vadd.f32 %v213, %v217
    %v220 = vadd.f32 %v214, %v217
    %221 = vst.msk [vmem:[#allocation6] sm:$0xff] %vm153, %v219
    %222 = vst.msk [vmem:[#allocation6 + $0x8] sm:$0xff] %vm153, %v220
    // Predicated region
    $region62: #{tpu_custom_call.1} parent=1 // pred_check
      _
    $region63: #{tpu_custom_call.1} parent=1 // pred_check_branch
      %224 = sbr.rel (0) target = $region65
    $region64: #{tpu_custom_call.1} parent=1 // pred_region
      %226 = vsyncadd [#allocation7], 0
      %s227 = sshll.u32 [#allocation6], 4
      %s228 = int_to_ptr.vmem [resolvable:$true] %s227
      %s229 = sshll.u32 %s6, 4
      %s230 = int_to_ptr.hbm [resolvable:$true] %s229
      %235 = dma.vmem_to_hbm [thread:$0]  %s228, 256, %s230, [#allocation7], 128, 128, 8
    $region65: #{tpu_custom_call.1} parent=1 // pred_fallthru
      _
    // Predicated region
    $region66: #{tpu_custom_call.1} parent=1 // pred_check
      _
    $region67: #{tpu_custom_call.1} parent=1 // pred_check_branch
      %237 = sbr.rel (0) target = $region69
    $region68: #{tpu_custom_call.1} parent=1 // pred_region
      %239 = dma.done [#allocation7], 256
    $region69: #{tpu_custom_call.1} parent=1 // pred_fallthru
      _
    %240 = vsyncpa [#allocation7], 1
  %241 = vsyncmov [#allocation3]
  %s242 = vpop.sfrf %241
  %p243 = scmp.eq.s32.totalorder %s242, 0
  %p244 = pneg %p243
  %246 = shalt.err (%p244)

</llo_original>
